<compile_context>
chip_gen: v6e
topology: v6e:2x2x1
jax: 0.10.0
libtpu: 0.0.40
codegen_flags: <defaults>
</compile_context>

<pallas_src>
import jax
import jax.numpy as jnp
import numpy as np
from jax.experimental import pallas as pl
from jax.experimental.pallas import tpu as pltpu


def _round_up(x, m):
    return ((x + m - 1) // m) * m


# Working-set VMEM target for one grid step's (x, out, weight) blocks.
# Chosen to fit TPU v7x (64 MiB physical VMEM, 32 MiB default scoped) with
# headroom; v5e/v6e have 128 MiB and could go ~2x larger.
_TILE_VMEM_BUDGET = 24 << 20


def _spectral_mul_kernel(x_ref, w_ref, o_ref):
    """out[o,b,m] = sum_i x[i,b,m] * w[i,o,m] (complex), one corner x one batch tile.

    Layouts (f32); leading axis = [real, imag] of the current corner:
      x_ref: (2, Cin,  bt,  Mp)   bt is a multiple of 8 -> full sublanes
      w_ref: (2, Cin,  Cout, Mp)
      o_ref: (2, Cout, bt,  Mp)   bt on the sublane axis -> unmasked stores

    Explicit unrolled accumulation over Cin: live data per step is one Cin
    slice plus two (Cout, bt, Mp) accumulators (no 4-D broadcast intermediates).
    """
    _, cin, _, _ = x_ref.shape
    acc_r = None
    acc_i = None
    for i in range(cin):                      # static unrolled loop (small Cin)
        xr = x_ref[0, i][None, :, :]          # (1, bt, Mp)
        xi = x_ref[1, i][None, :, :]
        wr = w_ref[0, i][:, None, :]          # (Cout, 1, Mp)
        wi = w_ref[1, i][:, None, :]
        pr = xr * wr - xi * wi                # (Cout, bt, Mp)
        pi = xr * wi + xi * wr
        acc_r = pr if acc_r is None else acc_r + pr
        acc_i = pi if acc_i is None else acc_i + pi
    o_ref[0] = acc_r
    o_ref[1] = acc_i


def _tile_plan(B, Cin, Cout, Mp):
    """Pick batch tile, padded batch, VMEM limit and weight buffering."""
    x_row = 2 * Cin * Mp * 4                  # x block bytes per batch row (re+im)
    o_row = 2 * Cout * Mp * 4                 # out block bytes per batch row
    row_bytes = 2 * (x_row + o_row)           # x + out, double-buffered by pipeline
    w_block = 2 * Cin * Cout * Mp * 4         # per-corner weight block (re+im)
    single_w = w_block >= (1 << 20)           # only bother for production sizes
    w_resident = w_block if single_w else 2 * w_block
    avail = max(_TILE_VMEM_BUDGET - w_resident, 8 * row_bytes)
    bt_cap = max(8, (avail // row_bytes) // 8 * 8)
    bt = int(min(bt_cap, _round_up(B, 8)))    # largest tile that fits / covers B
    Bp = _round_up(B, bt)
    footprint = bt * row_bytes + w_resident
    vmem_limit = int(min(max(footprint + footprint // 2 + (2 << 20), 32 << 20),
                         56 << 20))
    return bt, Bp, vmem_limit, single_w


def _spectral_contract(x_packed, w_packed, bt, vmem_limit_bytes, single_buffer_w):
    """x_packed: (4, Cin, Bp, Mp) f32, w_packed: (4, Cin, Cout, Mp) f32
    -> (4, Cout, Bp, Mp) f32.  Leading order: [c0.re, c0.im, c1.re, c1.im].

    Grid = (corner, batch-tile).  The corner axis stays OUTERMOST and "parallel"
    so the weight block index changes only twice over the whole grid (2 weight
    DMAs total) and v7x's two TensorCores can each take one corner.
    NOTE: correctness relies on the leading block dim being exactly 2 — block
    index c selects rows [2c, 2c+1] = (corner c).re / .im.  Don't change it.
    """
    four, Cin, Bp, Mp = x_packed.shape
    assert four == 4 and w_packed.shape[0] == 4
    Cout = w_packed.shape[2]
    assert Bp % bt == 0 and bt % 8 == 0

    w_kwargs = {}
    if single_buffer_w:
        # Production-size weights: single-buffer the VMEM-resident weight block
        # (its block index only changes with the corner axis, so this costs no
        # pipeline overlap and halves resident footprint — matters on v7x).
        w_kwargs["pipeline_mode"] = pl.Buffered(1)

    return pl.pallas_call(
        _spectral_mul_kernel,
        out_shape=jax.ShapeDtypeStruct((4, Cout, Bp, Mp), jnp.float32),
        grid=(2, Bp // bt),
        in_specs=[
            # x: per-corner, per-batch-tile block (pipelined against compute).
            pl.BlockSpec((2, Cin, bt, Mp), lambda c, b: (c, 0, b, 0)),
            # weights: per-corner block, VMEM-resident across the batch axis.
            pl.BlockSpec((2, Cin, Cout, Mp), lambda c, b: (c, 0, 0, 0), **w_kwargs),
        ],
        out_specs=pl.BlockSpec((2, Cout, bt, Mp), lambda c, b: (c, 0, b, 0)),
        compiler_params=pltpu.CompilerParams(
            dimension_semantics=("parallel", "parallel"),
            vmem_limit_bytes=vmem_limit_bytes),
    )(x_packed, w_packed)


class SpectralConv2dFast:
    """JAX/Pallas port of SpectralConv2d_fast (NCHW float32 input)."""

    def __init__(self, in_channels, out_channels, modes1, modes2, key):
        self.in_channels = in_channels
        self.out_channels = out_channels
        self.modes1 = modes1
        self.modes2 = modes2
        scale = 1.0 / (in_channels * out_channels)
        k1, k2, k3, k4 = jax.random.split(key, 4)
        shape = (in_channels, out_channels, modes1, modes2)
        # torch.rand(..., dtype=cfloat): real and imag parts each Uniform[0, 1).
        self.weights1 = (scale * jax.random.uniform(k1, shape, jnp.float32)
                         + 1j * scale * jax.random.uniform(k2, shape, jnp.float32)
                         ).astype(jnp.complex64)
        self.weights2 = (scale * jax.random.uniform(k3, shape, jnp.float32)
                         + 1j * scale * jax.random.uniform(k4, shape, jnp.float32)
                         ).astype(jnp.complex64)

        # Pre-split / pre-layout weights ONCE for the kernel:
        #   (4, Cin, Cout, Mp) f32, leading order [c0.re, c0.im, c1.re, c1.im].
        # Lane axis = flattened modes; pad to a multiple of 128 only when M is
        # already large (lane-dense unmasked stores).  For tiny M (4x4 test ->
        # M=16) keep it unpadded so DMAs don't carry 8x zero padding (a block
        # lane dim equal to the full array dim is legal).
        M = modes1 * modes2
        self._M = M
        self._Mp = _round_up(M, 128) if M >= 128 else M
        w = jnp.stack([self.weights1, self.weights2], axis=0)   # (2,Ci,Co,m1,m2)
        wr = jnp.real(w).reshape(2, in_channels, out_channels, M)
        wi = jnp.imag(w).reshape(2, in_channels, out_channels, M)
        w_ri = jnp.stack([wr, wi], axis=1).reshape(4, in_channels, out_channels, M)
        self._w_packed = jnp.pad(
            w_ri, ((0, 0), (0, 0), (0, 0), (0, self._Mp - M))).astype(jnp.float32)

        # Run the whole forward under a single jit so the corner gather / pack /
        # pad fuses with the FFT output instead of extra HBM round-trips.
        self._jit_forward = jax.jit(self._forward_impl)

    def __call__(self, x):
        return self._jit_forward(x, self._w_packed)

    def _forward_impl(self, x, w_packed):
        # x: (B, Cin, H, W) float32 (NCHW, as in PyTorch)
        B, Cin, H, W = x.shape
        Cout = self.out_channels
        m1, m2 = self.modes1, self.modes2
        M, Mp = self._M, self._Mp
        Wf = W // 2 + 1

        x_ft = jnp.fft.rfft2(x).astype(jnp.complex64)            # (B, Cin, H, Wf)

        # Gather the two low-frequency corners and lay them out as
        # (4, Cin, B, M) f32, leading order [c0.re, c0.im, c1.re, c1.im].
        xc = jnp.stack([x_ft[:, :, :m1, :m2], x_ft[:, :, H - m1:, :m2]], axis=0)
        xc = jnp.transpose(xc.reshape(2, B, Cin, M), (0, 2, 1, 3))   # (2,Cin,B,M)
        x_ri = jnp.stack([jnp.real(xc), jnp.imag(xc)], axis=1)       # (2,2,Cin,B,M)
        x_ri = x_ri.reshape(4, Cin, B, M).astype(jnp.float32)

        bt, Bp, vmem_limit, single_w = _tile_plan(B, Cin, Cout, Mp)
        x_ri = jnp.pad(x_ri, ((0, 0), (0, 0), (0, Bp - B), (0, Mp - M)))

        out_ri = _spectral_contract(x_ri, w_packed, bt, vmem_limit, single_w)
        # out_ri: (4, Cout, Bp, Mp)

        out_ri = out_ri[:, :, :B, :M].reshape(2, 2, Cout, B, m1, m2)
        out_c = (out_ri[:, 0] + 1j * out_ri[:, 1]).astype(jnp.complex64)
        out_c = jnp.transpose(out_c, (0, 2, 1, 3, 4))            # (2, B, Cout, m1, m2)

        # Assemble out_ft with a single pad + concatenate (avoids two full-array
        # scatter copies); fall back to overwrite semantics if the corners
        # overlap (H < 2*modes1) to exactly match the PyTorch reference.
        if H >= 2 * m1:
            top = jnp.pad(out_c[0], ((0, 0), (0, 0), (0, 0), (0, Wf - m2)))
            bot = jnp.pad(out_c[1], ((0, 0), (0, 0), (0, 0), (0, Wf - m2)))
            mid = jnp.zeros((B, Cout, H - 2 * m1, Wf), jnp.complex64)
            out_ft = jnp.concatenate([top, mid, bot], axis=2)
        else:
            out_ft = jnp.zeros((B, Cout, H, Wf), jnp.complex64)
            out_ft = out_ft.at[:, :, :m1, :m2].set(out_c[0])
            out_ft = out_ft.at[:, :, H - m1:, :m2].set(out_c[1])

        return jnp.fft.irfft2(out_ft, s=(H, W)).astype(jnp.float32)


def _reference_forward(x, w1, w2, modes1, modes2, out_channels):
    """Pure-JAX reference (mirrors the PyTorch forward) for a correctness check."""
    B, Cin, H, W = x.shape
    Wf = W // 2 + 1
    x_ft = jnp.fft.rfft2(x).astype(jnp.complex64)
    o1 = jnp.einsum('bixy,ioxy->boxy', x_ft[:, :, :modes1, :modes2], w1)
    o2 = jnp.einsum('bixy,ioxy->boxy', x_ft[:, :, -modes1:, :modes2], w2)
    out_ft = jnp.zeros((B, out_channels, H, Wf), jnp.complex64)
    out_ft = out_ft.at[:, :, :modes1, :modes2].set(o1)
    out_ft = out_ft.at[:, :, H - modes1:, :modes2].set(o2)
    return jnp.fft.irfft2(out_ft, s=(H, W)).astype(jnp.float32)


if __name__ == "__main__":
    key = jax.random.PRNGKey(0)
    k_x, k_w = jax.random.split(key)

    B, Cin, Cout, H, W = 2, 4, 4, 16, 16
    modes1, modes2 = 4, 4

    x = jax.random.normal(k_x, (B, Cin, H, W), jnp.float32)

    layer = SpectralConv2dFast(Cin, Cout, modes1, modes2, k_w)

    y = layer(x)
    y = jax.block_until_ready(y)

    y_ref = _reference_forward(x, layer.weights1, layer.weights2,
                               modes1, modes2, Cout)
    np.testing.assert_allclose(np.asarray(y), np.asarray(y_ref),
                               rtol=1e-4, atol=1e-5)

    print("KERNEL_OK")
</pallas_src>

<mosaic_0001>
module attributes {stable_mosaic.version = 11 : i64} {
  func.func @_spectral_mul_kernel(%arg0: i32, %arg1: i32, %arg2: memref<2x4x8x16xf32, #tpu.memory_space<vmem>>, %arg3: memref<2x4x4x16xf32, #tpu.memory_space<vmem>>, %arg4: memref<2x4x8x16xf32, #tpu.memory_space<vmem>>) attributes {dimension_semantics = [#tpu.dimension_semantics<parallel>, #tpu.dimension_semantics<parallel>], iteration_bounds = array<i64: 2, 1>, scalar_prefetch = 0 : i64, scratch_operands = 0 : i64, tpu.core_type = #tpu.core_type<tc>, window_params = [{transform_indices = @transform_0, window_bounds = array<i64: 2, 4, 8, 16>}, {transform_indices = @transform_1, window_bounds = array<i64: 2, 4, 4, 16>}, {transform_indices = @transform_2, window_bounds = array<i64: 2, 4, 8, 16>}]} {
    %c0 = arith.constant 0 : index
    %c0_0 = arith.constant 0 : index
    %c0_1 = arith.constant 0 : index
    %c0_2 = arith.constant 0 : index
    %0 = vector.load %arg2[%c0, %c0_0, %c0_1, %c0_2] : memref<2x4x8x16xf32, #tpu.memory_space<vmem>>, vector<1x1x8x16xf32>
    %1 = vector.shape_cast %0 : vector<1x1x8x16xf32> to vector<8x16xf32>
    %2 = vector.shape_cast %1 : vector<8x16xf32> to vector<1x8x16xf32>
    %c1 = arith.constant 1 : index
    %c0_3 = arith.constant 0 : index
    %c0_4 = arith.constant 0 : index
    %c0_5 = arith.constant 0 : index
    %3 = vector.load %arg2[%c1, %c0_3, %c0_4, %c0_5] : memref<2x4x8x16xf32, #tpu.memory_space<vmem>>, vector<1x1x8x16xf32>
    %4 = vector.shape_cast %3 : vector<1x1x8x16xf32> to vector<8x16xf32>
    %5 = vector.shape_cast %4 : vector<8x16xf32> to vector<1x8x16xf32>
    %c0_6 = arith.constant 0 : index
    %c0_7 = arith.constant 0 : index
    %c0_8 = arith.constant 0 : index
    %c0_9 = arith.constant 0 : index
    %6 = vector.load %arg3[%c0_6, %c0_7, %c0_8, %c0_9] : memref<2x4x4x16xf32, #tpu.memory_space<vmem>>, vector<1x1x4x16xf32>
    %7 = vector.shape_cast %6 : vector<1x1x4x16xf32> to vector<4x16xf32>
    %8 = vector.shape_cast %7 : vector<4x16xf32> to vector<4x1x16xf32>
    %c1_10 = arith.constant 1 : index
    %c0_11 = arith.constant 0 : index
    %c0_12 = arith.constant 0 : index
    %c0_13 = arith.constant 0 : index
    %9 = vector.load %arg3[%c1_10, %c0_11, %c0_12, %c0_13] : memref<2x4x4x16xf32, #tpu.memory_space<vmem>>, vector<1x1x4x16xf32>
    %10 = vector.shape_cast %9 : vector<1x1x4x16xf32> to vector<4x16xf32>
    %11 = vector.shape_cast %10 : vector<4x16xf32> to vector<4x1x16xf32>
    %12 = vector.broadcast %2 : vector<1x8x16xf32> to vector<4x8x16xf32>
    %13 = vector.broadcast %8 : vector<4x1x16xf32> to vector<4x8x16xf32>
    %14 = arith.mulf %12, %13 : vector<4x8x16xf32>
    %15 = vector.broadcast %5 : vector<1x8x16xf32> to vector<4x8x16xf32>
    %16 = vector.broadcast %11 : vector<4x1x16xf32> to vector<4x8x16xf32>
    %17 = arith.mulf %15, %16 : vector<4x8x16xf32>
    %18 = arith.subf %14, %17 : vector<4x8x16xf32>
    %19 = vector.broadcast %2 : vector<1x8x16xf32> to vector<4x8x16xf32>
    %20 = vector.broadcast %11 : vector<4x1x16xf32> to vector<4x8x16xf32>
    %21 = arith.mulf %19, %20 : vector<4x8x16xf32>
    %22 = vector.broadcast %5 : vector<1x8x16xf32> to vector<4x8x16xf32>
    %23 = vector.broadcast %8 : vector<4x1x16xf32> to vector<4x8x16xf32>
    %24 = arith.mulf %22, %23 : vector<4x8x16xf32>
    %25 = arith.addf %21, %24 : vector<4x8x16xf32>
    %c0_14 = arith.constant 0 : index
    %c1_15 = arith.constant 1 : index
    %c0_16 = arith.constant 0 : index
    %c0_17 = arith.constant 0 : index
    %26 = vector.load %arg2[%c0_14, %c1_15, %c0_16, %c0_17] : memref<2x4x8x16xf32, #tpu.memory_space<vmem>>, vector<1x1x8x16xf32>
    %27 = vector.shape_cast %26 : vector<1x1x8x16xf32> to vector<8x16xf32>
    %28 = vector.shape_cast %27 : vector<8x16xf32> to vector<1x8x16xf32>
    %c1_18 = arith.constant 1 : index
    %c1_19 = arith.constant 1 : index
    %c0_20 = arith.constant 0 : index
    %c0_21 = arith.constant 0 : index
    %29 = vector.load %arg2[%c1_18, %c1_19, %c0_20, %c0_21] : memref<2x4x8x16xf32, #tpu.memory_space<vmem>>, vector<1x1x8x16xf32>
    %30 = vector.shape_cast %29 : vector<1x1x8x16xf32> to vector<8x16xf32>
    %31 = vector.shape_cast %30 : vector<8x16xf32> to vector<1x8x16xf32>
    %c0_22 = arith.constant 0 : index
    %c1_23 = arith.constant 1 : index
    %c0_24 = arith.constant 0 : index
    %c0_25 = arith.constant 0 : index
    %32 = vector.load %arg3[%c0_22, %c1_23, %c0_24, %c0_25] : memref<2x4x4x16xf32, #tpu.memory_space<vmem>>, vector<1x1x4x16xf32>
    %33 = vector.shape_cast %32 : vector<1x1x4x16xf32> to vector<4x16xf32>
    %34 = vector.shape_cast %33 : vector<4x16xf32> to vector<4x1x16xf32>
    %c1_26 = arith.constant 1 : index
    %c1_27 = arith.constant 1 : index
    %c0_28 = arith.constant 0 : index
    %c0_29 = arith.constant 0 : index
    %35 = vector.load %arg3[%c1_26, %c1_27, %c0_28, %c0_29] : memref<2x4x4x16xf32, #tpu.memory_space<vmem>>, vector<1x1x4x16xf32>
    %36 = vector.shape_cast %35 : vector<1x1x4x16xf32> to vector<4x16xf32>
    %37 = vector.shape_cast %36 : vector<4x16xf32> to vector<4x1x16xf32>
    %38 = vector.broadcast %28 : vector<1x8x16xf32> to vector<4x8x16xf32>
    %39 = vector.broadcast %34 : vector<4x1x16xf32> to vector<4x8x16xf32>
    %40 = arith.mulf %38, %39 : vector<4x8x16xf32>
    %41 = vector.broadcast %31 : vector<1x8x16xf32> to vector<4x8x16xf32>
    %42 = vector.broadcast %37 : vector<4x1x16xf32> to vector<4x8x16xf32>
    %43 = arith.mulf %41, %42 : vector<4x8x16xf32>
    %44 = arith.subf %40, %43 : vector<4x8x16xf32>
    %45 = vector.broadcast %28 : vector<1x8x16xf32> to vector<4x8x16xf32>
    %46 = vector.broadcast %37 : vector<4x1x16xf32> to vector<4x8x16xf32>
    %47 = arith.mulf %45, %46 : vector<4x8x16xf32>
    %48 = vector.broadcast %31 : vector<1x8x16xf32> to vector<4x8x16xf32>
    %49 = vector.broadcast %34 : vector<4x1x16xf32> to vector<4x8x16xf32>
    %50 = arith.mulf %48, %49 : vector<4x8x16xf32>
    %51 = arith.addf %47, %50 : vector<4x8x16xf32>
    %52 = arith.addf %18, %44 : vector<4x8x16xf32>
    %53 = arith.addf %25, %51 : vector<4x8x16xf32>
    %c0_30 = arith.constant 0 : index
    %c2 = arith.constant 2 : index
    %c0_31 = arith.constant 0 : index
    %c0_32 = arith.constant 0 : index
    %54 = vector.load %arg2[%c0_30, %c2, %c0_31, %c0_32] : memref<2x4x8x16xf32, #tpu.memory_space<vmem>>, vector<1x1x8x16xf32>
    %55 = vector.shape_cast %54 : vector<1x1x8x16xf32> to vector<8x16xf32>
    %56 = vector.shape_cast %55 : vector<8x16xf32> to vector<1x8x16xf32>
    %c1_33 = arith.constant 1 : index
    %c2_34 = arith.constant 2 : index
    %c0_35 = arith.constant 0 : index
    %c0_36 = arith.constant 0 : index
    %57 = vector.load %arg2[%c1_33, %c2_34, %c0_35, %c0_36] : memref<2x4x8x16xf32, #tpu.memory_space<vmem>>, vector<1x1x8x16xf32>
    %58 = vector.shape_cast %57 : vector<1x1x8x16xf32> to vector<8x16xf32>
    %59 = vector.shape_cast %58 : vector<8x16xf32> to vector<1x8x16xf32>
    %c0_37 = arith.constant 0 : index
    %c2_38 = arith.constant 2 : index
    %c0_39 = arith.constant 0 : index
    %c0_40 = arith.constant 0 : index
    %60 = vector.load %arg3[%c0_37, %c2_38, %c0_39, %c0_40] : memref<2x4x4x16xf32, #tpu.memory_space<vmem>>, vector<1x1x4x16xf32>
    %61 = vector.shape_cast %60 : vector<1x1x4x16xf32> to vector<4x16xf32>
    %62 = vector.shape_cast %61 : vector<4x16xf32> to vector<4x1x16xf32>
    %c1_41 = arith.constant 1 : index
    %c2_42 = arith.constant 2 : index
    %c0_43 = arith.constant 0 : index
    %c0_44 = arith.constant 0 : index
    %63 = vector.load %arg3[%c1_41, %c2_42, %c0_43, %c0_44] : memref<2x4x4x16xf32, #tpu.memory_space<vmem>>, vector<1x1x4x16xf32>
    %64 = vector.shape_cast %63 : vector<1x1x4x16xf32> to vector<4x16xf32>
    %65 = vector.shape_cast %64 : vector<4x16xf32> to vector<4x1x16xf32>
    %66 = vector.broadcast %56 : vector<1x8x16xf32> to vector<4x8x16xf32>
    %67 = vector.broadcast %62 : vector<4x1x16xf32> to vector<4x8x16xf32>
    %68 = arith.mulf %66, %67 : vector<4x8x16xf32>
    %69 = vector.broadcast %59 : vector<1x8x16xf32> to vector<4x8x16xf32>
    %70 = vector.broadcast %65 : vector<4x1x16xf32> to vector<4x8x16xf32>
    %71 = arith.mulf %69, %70 : vector<4x8x16xf32>
    %72 = arith.subf %68, %71 : vector<4x8x16xf32>
    %73 = vector.broadcast %56 : vector<1x8x16xf32> to vector<4x8x16xf32>
    %74 = vector.broadcast %65 : vector<4x1x16xf32> to vector<4x8x16xf32>
    %75 = arith.mulf %73, %74 : vector<4x8x16xf32>
    %76 = vector.broadcast %59 : vector<1x8x16xf32> to vector<4x8x16xf32>
    %77 = vector.broadcast %62 : vector<4x1x16xf32> to vector<4x8x16xf32>
    %78 = arith.mulf %76, %77 : vector<4x8x16xf32>
    %79 = arith.addf %75, %78 : vector<4x8x16xf32>
    %80 = arith.addf %52, %72 : vector<4x8x16xf32>
    %81 = arith.addf %53, %79 : vector<4x8x16xf32>
    %c0_45 = arith.constant 0 : index
    %c3 = arith.constant 3 : index
    %c0_46 = arith.constant 0 : index
    %c0_47 = arith.constant 0 : index
    %82 = vector.load %arg2[%c0_45, %c3, %c0_46, %c0_47] : memref<2x4x8x16xf32, #tpu.memory_space<vmem>>, vector<1x1x8x16xf32>
    %83 = vector.shape_cast %82 : vector<1x1x8x16xf32> to vector<8x16xf32>
    %84 = vector.shape_cast %83 : vector<8x16xf32> to vector<1x8x16xf32>
    %c1_48 = arith.constant 1 : index
    %c3_49 = arith.constant 3 : index
    %c0_50 = arith.constant 0 : index
    %c0_51 = arith.constant 0 : index
    %85 = vector.load %arg2[%c1_48, %c3_49, %c0_50, %c0_51] : memref<2x4x8x16xf32, #tpu.memory_space<vmem>>, vector<1x1x8x16xf32>
    %86 = vector.shape_cast %85 : vector<1x1x8x16xf32> to vector<8x16xf32>
    %87 = vector.shape_cast %86 : vector<8x16xf32> to vector<1x8x16xf32>
    %c0_52 = arith.constant 0 : index
    %c3_53 = arith.constant 3 : index
    %c0_54 = arith.constant 0 : index
    %c0_55 = arith.constant 0 : index
    %88 = vector.load %arg3[%c0_52, %c3_53, %c0_54, %c0_55] : memref<2x4x4x16xf32, #tpu.memory_space<vmem>>, vector<1x1x4x16xf32>
    %89 = vector.shape_cast %88 : vector<1x1x4x16xf32> to vector<4x16xf32>
    %90 = vector.shape_cast %89 : vector<4x16xf32> to vector<4x1x16xf32>
    %c1_56 = arith.constant 1 : index
    %c3_57 = arith.constant 3 : index
    %c0_58 = arith.constant 0 : index
    %c0_59 = arith.constant 0 : index
    %91 = vector.load %arg3[%c1_56, %c3_57, %c0_58, %c0_59] : memref<2x4x4x16xf32, #tpu.memory_space<vmem>>, vector<1x1x4x16xf32>
    %92 = vector.shape_cast %91 : vector<1x1x4x16xf32> to vector<4x16xf32>
    %93 = vector.shape_cast %92 : vector<4x16xf32> to vector<4x1x16xf32>
    %94 = vector.broadcast %84 : vector<1x8x16xf32> to vector<4x8x16xf32>
    %95 = vector.broadcast %90 : vector<4x1x16xf32> to vector<4x8x16xf32>
    %96 = arith.mulf %94, %95 : vector<4x8x16xf32>
    %97 = vector.broadcast %87 : vector<1x8x16xf32> to vector<4x8x16xf32>
    %98 = vector.broadcast %93 : vector<4x1x16xf32> to vector<4x8x16xf32>
    %99 = arith.mulf %97, %98 : vector<4x8x16xf32>
    %100 = arith.subf %96, %99 : vector<4x8x16xf32>
    %101 = vector.broadcast %84 : vector<1x8x16xf32> to vector<4x8x16xf32>
    %102 = vector.broadcast %93 : vector<4x1x16xf32> to vector<4x8x16xf32>
    %103 = arith.mulf %101, %102 : vector<4x8x16xf32>
    %104 = vector.broadcast %87 : vector<1x8x16xf32> to vector<4x8x16xf32>
    %105 = vector.broadcast %90 : vector<4x1x16xf32> to vector<4x8x16xf32>
    %106 = arith.mulf %104, %105 : vector<4x8x16xf32>
    %107 = arith.addf %103, %106 : vector<4x8x16xf32>
    %108 = arith.addf %80, %100 : vector<4x8x16xf32>
    %109 = arith.addf %81, %107 : vector<4x8x16xf32>
    %c0_60 = arith.constant 0 : index
    %c0_61 = arith.constant 0 : index
    %c0_62 = arith.constant 0 : index
    %c0_63 = arith.constant 0 : index
    %110 = vector.load %arg4[%c0_60, %c0_61, %c0_62, %c0_63] : memref<2x4x8x16xf32, #tpu.memory_space<vmem>>, vector<1x4x8x16xf32>
    %111 = vector.shape_cast %110 : vector<1x4x8x16xf32> to vector<4x8x16xf32>
    %112 = vector.shape_cast %108 : vector<4x8x16xf32> to vector<1x4x8x16xf32>
    tpu.vector_store %arg4[%c0_60, %c0_61, %c0_62, %c0_63], %112 {strides = array<i32>} : memref<2x4x8x16xf32, #tpu.memory_space<vmem>>, vector<1x4x8x16xf32>,
    %c1_64 = arith.constant 1 : index
    %c0_65 = arith.constant 0 : index
    %c0_66 = arith.constant 0 : index
    %c0_67 = arith.constant 0 : index
    %113 = vector.load %arg4[%c1_64, %c0_65, %c0_66, %c0_67] : memref<2x4x8x16xf32, #tpu.memory_space<vmem>>, vector<1x4x8x16xf32>
    %114 = vector.shape_cast %113 : vector<1x4x8x16xf32> to vector<4x8x16xf32>
    %115 = vector.shape_cast %109 : vector<4x8x16xf32> to vector<1x4x8x16xf32>
    tpu.vector_store %arg4[%c1_64, %c0_65, %c0_66, %c0_67], %115 {strides = array<i32>} : memref<2x4x8x16xf32, #tpu.memory_space<vmem>>, vector<1x4x8x16xf32>,
    return
  }
  func.func @transform_0(%arg0: i32, %arg1: i32) -> (i32, i32, i32, i32) {
    %c0_i32 = arith.constant 0 : i32
    %c0_i32_0 = arith.constant 0 : i32
    %c0_i32_1 = arith.constant 0 : i32
    return %arg0, %c0_i32, %arg1, %c0_i32_0 : i32, i32, i32, i32
  }
  func.func @transform_1(%arg0: i32, %arg1: i32) -> (i32, i32, i32, i32) {
    %c0_i32 = arith.constant 0 : i32
    %c0_i32_0 = arith.constant 0 : i32
    %c0_i32_1 = arith.constant 0 : i32
    %c0_i32_2 = arith.constant 0 : i32
    return %arg0, %c0_i32, %c0_i32_0, %c0_i32_1 : i32, i32, i32, i32
  }
  func.func @transform_2(%arg0: i32, %arg1: i32) -> (i32, i32, i32, i32) {
    %c0_i32 = arith.constant 0 : i32
    %c0_i32_0 = arith.constant 0 : i32
    %c0_i32_1 = arith.constant 0 : i32
    return %arg0, %c0_i32, %arg1, %c0_i32_0 : i32, i32, i32, i32
  }
}

</mosaic_0001>

<llo_original>
// kernel: _forward_impl.1
$region0: #{_forward_impl.1}
  #allocation0 [shape = 'u32[]', space=smem, size = 0x4, offset = 0x4, fixed_abs, tag = 'smem constant byte address 0x4 - core index']
  #allocation1 [shape = 'u32[144,128]{1,0:T(1,128)}', space=vmem, size = 0x12000, scoped, tag = 'internal scratch']
  %s0 = inlined_call_operand.vmem [shape: f32[4,4,8,16], index: 0, kind: input, shape index: {}]
  %s1 = inlined_call_operand.vmem [shape: f32[4,4,4,16], index: 1, kind: input, shape index: {}]
  %s2 = inlined_call_operand.vmem [shape: f32[4,4,8,16], index: 2, kind: output, shape index: {}]
  %s3 = sld [smem:[#allocation0]]
  $region41: #{_forward_impl.1} parent=0
    _
  %s5 = ssub.s32 1, %s3
  %s6 = scalar_select 0, %s5, %s3
  loop: start=0, step=1, limit=4
  $region2: #{_forward_impl.1} parent=0 // loop_pre_header
    _
  $region3: #{_forward_impl.1} parent=0 // loop_header
    %s8 = sphi 0, %s12
    %p9 = scmp.ge.s32.totalorder %s8, 4
    %s15 = sphi 0, %s27
    %s16 = sphi 0, %s23
    %s17 = sphi 0, %s15
    %s18 = sphi 0, %s16
    %s19 = sphi 0, %s17
    %s20 = sphi 0, %s18
    %s32 = sphi 0, %s34
    %s35 = sphi 0, %s32
    %s36 = sphi 0, %s35
    %s52 = sphi 0, %s36
    %s58 = sphi 0, %s60
    %s61 = sphi 0, %s58
    %s62 = sphi 0, %s61
    %s78 = sphi 0, %s62
    %s86 = sphi 0, %s88
    %s89 = sphi 0, %s86
    %s90 = sphi 0, %s89
    %s106 = sphi 0, %s90
  $region4: #{_forward_impl.1} parent=0 // loop_header_branch
    %11 = sbr.rel (%p9) target = $region8
  $region5: #{_forward_impl.1} parent=0 // loop_body
    %s13 = ssub.s32 %s8, 1
    %s14 = ssub.s32 %s8, 2
    %s21 = sadd.s32 1, %s16
    %p22 = scmp.ge.s32.totalorder %s21, 1
    %s23 = scalar_select %p22, 0, %s21
    %s24 = sadd.s32 1, %s15
    %s25 = scalar_select %p22, %s24, %s15
    %p26 = scmp.ge.s32.totalorder %s25, 2
    %s27 = scalar_select %p26, 0, %s25
    %s28 = ssub.s32 %s15, %s27
    %s29 = ssub.s32 %s16, %s23
    %s30 = sor.u32 %s28, %s29
    %p31 = scmp.eq.s32.totalorder %s30, 0
    %s33 = sadd.s32 %s32, 1
    %s34 = scalar_select %p31, %s32, %s33
    %p37 = pneg %p31
    %p38 = scmp.eq.s32.totalorder %s8, 1
    %p39 = por %p37, %p38
    %p40 = scmp.ne.s32.totalorder %s32, %s35
    %p41 = scmp.eq.s32.totalorder %s8, 0
    %p42 = por %p40, %p41
    %p43 = scmp.ne.s32.totalorder %s32, %s35
    %p44 = scmp.eq.s32.totalorder %s13, 1
    %p45 = por %p43, %p44
    %p46 = scmp.ne.s32.totalorder %s35, %s36
    %p47 = scmp.eq.s32.totalorder %s13, 0
    %p48 = por %p46, %p47
    %p49 = scmp.ne.s32.totalorder %s35, %s36
    %p50 = scmp.eq.s32.totalorder %s14, 1
    %p51 = por %p49, %p50
    %p53 = scmp.ne.s32.totalorder %s36, %s52
    %p54 = scmp.eq.s32.totalorder %s14, 0
    %p55 = por %p53, %p54
    %s56 = ssub.s32 %s15, %s27
    %p57 = scmp.eq.s32.totalorder %s56, 0
    %s59 = sadd.s32 %s58, 1
    %s60 = scalar_select %p57, %s58, %s59
    %p63 = pneg %p57
    %p64 = scmp.eq.s32.totalorder %s8, 1
    %p65 = por %p63, %p64
    %p66 = scmp.ne.s32.totalorder %s58, %s61
    %p67 = scmp.eq.s32.totalorder %s8, 0
    %p68 = por %p66, %p67
    %p69 = scmp.ne.s32.totalorder %s58, %s61
    %p70 = scmp.eq.s32.totalorder %s13, 1
    %p71 = por %p69, %p70
    %p72 = scmp.ne.s32.totalorder %s61, %s62
    %p73 = scmp.eq.s32.totalorder %s13, 0
    %p74 = por %p72, %p73
    %p75 = scmp.ne.s32.totalorder %s61, %s62
    %p76 = scmp.eq.s32.totalorder %s14, 1
    %p77 = por %p75, %p76
    %p79 = scmp.ne.s32.totalorder %s62, %s78
    %p80 = scmp.eq.s32.totalorder %s14, 0
    %p81 = por %p79, %p80
    %s82 = ssub.s32 %s15, %s27
    %s83 = ssub.s32 %s16, %s23
    %s84 = sor.u32 %s82, %s83
    %p85 = scmp.eq.s32.totalorder %s84, 0
    %s87 = sadd.s32 %s86, 1
    %s88 = scalar_select %p85, %s86, %s87
    %p91 = pneg %p85
    %p92 = scmp.eq.s32.totalorder %s8, 1
    %p93 = por %p91, %p92
    %p94 = scmp.ne.s32.totalorder %s86, %s89
    %p95 = scmp.eq.s32.totalorder %s8, 0
    %p96 = por %p94, %p95
    %p97 = scmp.ne.s32.totalorder %s86, %s89
    %p98 = scmp.eq.s32.totalorder %s13, 1
    %p99 = por %p97, %p98
    %p100 = scmp.ne.s32.totalorder %s89, %s90
    %p101 = scmp.eq.s32.totalorder %s13, 0
    %p102 = por %p100, %p101
    %p103 = scmp.ne.s32.totalorder %s89, %s90
    %p104 = scmp.eq.s32.totalorder %s14, 1
    %p105 = por %p103, %p104
    %p107 = scmp.ne.s32.totalorder %s90, %s106
    %p108 = scmp.eq.s32.totalorder %s14, 0
    %p109 = por %p107, %p108
    %p110 = scmp.le.s32.totalorder 1, %s8
    %p111 = scmp.lt.s32.totalorder %s8, 3
    %p112 = pnand %p110, %p111
    %p113 = pneg %p112
    // Predicated region
    $region9: #{_forward_impl.1} parent=5 // pred_check
      _
    $region10: #{_forward_impl.1} parent=5 // pred_check_branch
      %115 = sbr.rel (%p112) target = $region12
    $region11: #{_forward_impl.1} parent=5 // pred_region
      %s116 = ssub.s32 %s8, 1
    $region12: #{_forward_impl.1} parent=5 // pred_fallthru
      _
    %p117 = scmp.lt.s32.totalorder %s8, 2
    // Predicated region
    $region13: #{_forward_impl.1} parent=5 // pred_check
      %p118 = pneg %p117
    $region14: #{_forward_impl.1} parent=5 // pred_check_branch
      %120 = sbr.rel (%p118) target = $region16
    $region15: #{_forward_impl.1} parent=5 // pred_region
      // Predicated region
      $region17: #{_forward_impl.1} parent=15 // pred_check
        %p121 = pneg %p42
      $region18: #{_forward_impl.1} parent=15 // pred_check_branch
        %123 = sbr.rel (%p121) target = $region20
      $region19: #{_forward_impl.1} parent=15 // pred_region
        %s124 = smul.u32 2, %s15
        %p125 = scmp.lt.s32.totalorder %s124, 3
        %s126 = scalar_select %p125, %s124, 3
        %p127 = scmp.lt.s32.totalorder %s16, 0
        %s128 = scalar_select %p127, %s16, 0
        %s129 = smul.addr %s126, 4
        %s130 = sadd.s32 %s128, %s129
        %s131 = smul.addr %s130, 8
        %s132 = scalar_lea.vmem %s0, %s131
        %s133 = smul.u32 2, %s15
      $region20: #{_forward_impl.1} parent=15 // pred_fallthru
        _
      // Predicated region
      $region21: #{_forward_impl.1} parent=15 // pred_check
        %p134 = pneg %p68
      $region22: #{_forward_impl.1} parent=15 // pred_check_branch
        %136 = sbr.rel (%p134) target = $region24
      $region23: #{_forward_impl.1} parent=15 // pred_region
        %s137 = smul.u32 2, %s15
        %p138 = scmp.lt.s32.totalorder %s137, 3
        %s139 = scalar_select %p138, %s137, 3
        %s140 = smul.addr %s139, 4
        %s141 = smul.addr %s140, 4
        %s142 = scalar_lea.vmem %s1, %s141
        %s143 = smul.u32 2, %s15
      $region24: #{_forward_impl.1} parent=15 // pred_fallthru
        _
    $region16: #{_forward_impl.1} parent=5 // pred_fallthru
      _
    %p144 = scmp.le.s32.totalorder 1, %s8
    %p145 = scmp.lt.s32.totalorder %s8, 3
    %p146 = pnand %p144, %p145
    %p147 = pneg %p146
    // Predicated region
    $region25: #{_forward_impl.1} parent=5 // pred_check
      _
    $region26: #{_forward_impl.1} parent=5 // pred_check_branch
      %149 = sbr.rel (%p146) target = $region28
    $region27: #{_forward_impl.1} parent=5 // pred_region
      %s150 = ssub.s32 %s8, 1
      %s151 = smul.u32 2, %s17
      %p152 = scmp.lt.s32.totalorder %s151, 3
      %s153 = scalar_select %p152, %s151, 3
      %p154 = scmp.lt.s32.totalorder %s18, 0
      %s155 = scalar_select %p154, %s18, 0
      %s156 = smul.addr %s153, 4
      %s157 = sadd.s32 %s155, %s156
      %s158 = smul.addr %s157, 8
      %s159 = scalar_lea.vmem %s0, %s158
      %p160 = pneg %p48
      %p161 = pneg %p45
      %s162 = smul.u32 2, %s17
      %p163 = scmp.lt.s32.totalorder %s162, 3
      %s164 = scalar_select %p163, %s162, 3
      %s165 = smul.addr %s164, 4
      %s166 = smul.addr %s165, 4
      %s167 = scalar_lea.vmem %s1, %s166
      %p168 = pneg %p74
      %p169 = pneg %p71
      %p170 = pneg %p102
      %p171 = pneg %p99
      %s172 = smul.u32 2, %s17
      %p173 = scmp.lt.s32.totalorder %s172, 3
      %s174 = scalar_select %p173, %s172, 3
      %p175 = scmp.lt.s32.totalorder %s18, 0
      %s176 = scalar_select %p175, %s18, 0
      %s177 = smul.addr %s174, 4
      %s178 = sadd.s32 %s176, %s177
      %s179 = smul.addr %s178, 8
      %s180 = scalar_lea.vmem %s2, %s179
      %s181 = smul.u32 2, %s17
      %p182 = scmp.lt.s32.totalorder %s181, 3
      %s183 = scalar_select %p182, %s181, 3
      %p184 = scmp.lt.s32.totalorder %s18, 0
      %s185 = scalar_select %p184, %s18, 0
      %s186 = smul.addr %s183, 4
      %s187 = sadd.s32 %s185, %s186
      %s188 = smul.addr %s187, 8
      %s189 = scalar_lea.vmem %s0, %s188
      %s190 = smul.u32 2, %s17
      %s191 = smul.u32 2, %s17
      %p192 = scmp.lt.s32.totalorder %s191, 3
      %s193 = scalar_select %p192, %s191, 3
      %s194 = smul.addr %s193, 4
      %s195 = smul.addr %s194, 4
      %s196 = scalar_lea.vmem %s1, %s195
      %s197 = smul.u32 2, %s17
      %s198 = smul.u32 2, %s17
      %p199 = scmp.lt.s32.totalorder %s198, 3
      %s200 = scalar_select %p199, %s198, 3
      %p201 = scmp.lt.s32.totalorder %s18, 0
      %s202 = scalar_select %p201, %s18, 0
      %s203 = smul.addr %s200, 4
      %s204 = sadd.s32 %s202, %s203
      %s205 = smul.addr %s204, 8
      %s206 = scalar_lea.vmem %s2, %s205
      %s207 = smul.u32 2, %s17
      %v208 = vld [vmem:[%s189] sm:$0xff]
      %s209 = scalar_lea.vmem %s189, 32
      %v210 = vld [vmem:[%s209] sm:$0xff]
      %v211 = vld [vmem:[%s196] sm:$0xf]
      %v214 = vunpack.c.l.s4 1966171168
      %v215 = vunpack.c.0.s8 %v214
      %v216 = vlaneseq
      %v217 = vshrl.u32 %v216, 7
      %v218 = vsub.s32 %v215, %v217
      %v219 = vrot.slane %v211, %v218
      %v220 = vcombine.high %v219, %v219
      %v222 = vunpack.c.l.s4 1966171168
      %v223 = vunpack.c.0.s8 %v222
      %v224 = vlaneseq
      %v225 = vshrl.u32 %v224, 7
      %v226 = vsub.s32 %v223, %v225
      %v227 = vrot.slane %v219, %v226
      %v229 = vunpack.c.l.s4 1966171168
      %v230 = vunpack.c.0.s8 %v229
      %v231 = vlaneseq
      %v232 = vshrl.u32 %v231, 7
      %v233 = vsub.s32 %v230, %v232
      %v234 = vrot.slane %v220, %v233
      %v235 = vcombine.high %v227, %v227
      %v236 = vcombine.high %v234, %v234
      %s237 = scalar_lea.vmem %s196, 16
      %v238 = vld [vmem:[%s237] sm:$0xf]
      %v241 = vunpack.c.l.s4 1966171168
      %v242 = vunpack.c.0.s8 %v241
      %v243 = vlaneseq
      %v244 = vshrl.u32 %v243, 7
      %v245 = vsub.s32 %v242, %v244
      %v246 = vrot.slane %v238, %v245
      %v247 = vcombine.high %v246, %v246
      %v249 = vunpack.c.l.s4 1966171168
      %v250 = vunpack.c.0.s8 %v249
      %v251 = vlaneseq
      %v252 = vshrl.u32 %v251, 7
      %v253 = vsub.s32 %v250, %v252
      %v254 = vrot.slane %v246, %v253
      %v256 = vunpack.c.l.s4 1966171168
      %v257 = vunpack.c.0.s8 %v256
      %v258 = vlaneseq
      %v259 = vshrl.u32 %v258, 7
      %v260 = vsub.s32 %v257, %v259
      %v261 = vrot.slane %v247, %v260
      %v262 = vcombine.high %v254, %v254
      %v263 = vcombine.high %v261, %v261
      %v264 = vlaneseq
      %v265 = vshrl.u32 %v264, 7
      %v266 = vsub.s32 0, %v265
      %v267 = vrot.slane %v227, %v266
      %v268 = vlaneseq
      %v269 = vshrl.u32 %v268, 7
      %v270 = vsub.s32 0, %v269
      %v271 = vrot.slane %v234, %v270
      %v272 = vlaneseq
      %v273 = vshrl.u32 %v272, 7
      %v274 = vsub.s32 0, %v273
      %v275 = vrot.slane %v235, %v274
      %v276 = vlaneseq
      %v277 = vshrl.u32 %v276, 7
      %v278 = vsub.s32 0, %v277
      %v279 = vrot.slane %v236, %v278
      %v284 = vmul.f32 %v208, %v267
      %v285 = vmul.f32 %v208, %v271
      %v286 = vmul.f32 %v208, %v275
      %v287 = vmul.f32 %v208, %v279
      %v288 = vlaneseq
      %v289 = vshrl.u32 %v288, 7
      %v290 = vsub.s32 0, %v289
      %v291 = vrot.slane %v254, %v290
      %v292 = vlaneseq
      %v293 = vshrl.u32 %v292, 7
      %v294 = vsub.s32 0, %v293
      %v295 = vrot.slane %v261, %v294
      %v296 = vlaneseq
      %v297 = vshrl.u32 %v296, 7
      %v298 = vsub.s32 0, %v297
      %v299 = vrot.slane %v262, %v298
      %v300 = vlaneseq
      %v301 = vshrl.u32 %v300, 7
      %v302 = vsub.s32 0, %v301
      %v303 = vrot.slane %v263, %v302
      %v308 = vmul.f32 %v210, %v291
      %v309 = vmul.f32 %v210, %v295
      %v310 = vmul.f32 %v210, %v299
      %v311 = vmul.f32 %v210, %v303
      %v312 = vsub.f32 %v284, %v308
      %v313 = vsub.f32 %v285, %v309
      %v314 = vsub.f32 %v286, %v310
      %v315 = vsub.f32 %v287, %v311
      %v316 = vmul.f32 %v208, %v291
      %v317 = vmul.f32 %v208, %v295
      %v318 = vmul.f32 %v208, %v299
      %v319 = vmul.f32 %v208, %v303
      %v320 = vmul.f32 %v210, %v267
      %v321 = vmul.f32 %v210, %v271
      %v322 = vmul.f32 %v210, %v275
      %v323 = vmul.f32 %v210, %v279
      %v324 = vadd.f32 %v316, %v320
      %v325 = vadd.f32 %v317, %v321
      %v326 = vadd.f32 %v318, %v322
      %v327 = vadd.f32 %v319, %v323
      %s328 = scalar_lea.vmem %s189, 8
      %v329 = vld [vmem:[%s328] sm:$0xff]
      %s330 = scalar_lea.vmem %s189, 40
      %v331 = vld [vmem:[%s330] sm:$0xff]
      %s332 = scalar_lea.vmem %s196, 4
      %v333 = vld [vmem:[%s332] sm:$0xf]
      %v336 = vunpack.c.l.s4 1966171168
      %v337 = vunpack.c.0.s8 %v336
      %v338 = vlaneseq
      %v339 = vshrl.u32 %v338, 7
      %v340 = vsub.s32 %v337, %v339
      %v341 = vrot.slane %v333, %v340
      %v342 = vcombine.high %v341, %v341
      %v344 = vunpack.c.l.s4 1966171168
      %v345 = vunpack.c.0.s8 %v344
      %v346 = vlaneseq
      %v347 = vshrl.u32 %v346, 7
      %v348 = vsub.s32 %v345, %v347
      %v349 = vrot.slane %v341, %v348
      %v351 = vunpack.c.l.s4 1966171168
      %v352 = vunpack.c.0.s8 %v351
      %v353 = vlaneseq
      %v354 = vshrl.u32 %v353, 7
      %v355 = vsub.s32 %v352, %v354
      %v356 = vrot.slane %v342, %v355
      %v357 = vcombine.high %v349, %v349
      %v358 = vcombine.high %v356, %v356
      %s359 = scalar_lea.vmem %s196, 20
      %v360 = vld [vmem:[%s359] sm:$0xf]
      %v363 = vunpack.c.l.s4 1966171168
      %v364 = vunpack.c.0.s8 %v363
      %v365 = vlaneseq
      %v366 = vshrl.u32 %v365, 7
      %v367 = vsub.s32 %v364, %v366
      %v368 = vrot.slane %v360, %v367
      %v369 = vcombine.high %v368, %v368
      %v371 = vunpack.c.l.s4 1966171168
      %v372 = vunpack.c.0.s8 %v371
      %v373 = vlaneseq
      %v374 = vshrl.u32 %v373, 7
      %v375 = vsub.s32 %v372, %v374
      %v376 = vrot.slane %v368, %v375
      %v378 = vunpack.c.l.s4 1966171168
      %v379 = vunpack.c.0.s8 %v378
      %v380 = vlaneseq
      %v381 = vshrl.u32 %v380, 7
      %v382 = vsub.s32 %v379, %v381
      %v383 = vrot.slane %v369, %v382
      %v384 = vcombine.high %v376, %v376
      %v385 = vcombine.high %v383, %v383
      %v386 = vlaneseq
      %v387 = vshrl.u32 %v386, 7
      %v388 = vsub.s32 0, %v387
      %v389 = vrot.slane %v349, %v388
      %v390 = vlaneseq
      %v391 = vshrl.u32 %v390, 7
      %v392 = vsub.s32 0, %v391
      %v393 = vrot.slane %v356, %v392
      %v394 = vlaneseq
      %v395 = vshrl.u32 %v394, 7
      %v396 = vsub.s32 0, %v395
      %v397 = vrot.slane %v357, %v396
      %v398 = vlaneseq
      %v399 = vshrl.u32 %v398, 7
      %v400 = vsub.s32 0, %v399
      %v401 = vrot.slane %v358, %v400
      %v406 = vmul.f32 %v329, %v389
      %v407 = vmul.f32 %v329, %v393
      %v408 = vmul.f32 %v329, %v397
      %v409 = vmul.f32 %v329, %v401
      %v410 = vlaneseq
      %v411 = vshrl.u32 %v410, 7
      %v412 = vsub.s32 0, %v411
      %v413 = vrot.slane %v376, %v412
      %v414 = vlaneseq
      %v415 = vshrl.u32 %v414, 7
      %v416 = vsub.s32 0, %v415
      %v417 = vrot.slane %v383, %v416
      %v418 = vlaneseq
      %v419 = vshrl.u32 %v418, 7
      %v420 = vsub.s32 0, %v419
      %v421 = vrot.slane %v384, %v420
      %v422 = vlaneseq
      %v423 = vshrl.u32 %v422, 7
      %v424 = vsub.s32 0, %v423
      %v425 = vrot.slane %v385, %v424
      %v430 = vmul.f32 %v331, %v413
      %v431 = vmul.f32 %v331, %v417
      %v432 = vmul.f32 %v331, %v421
      %v433 = vmul.f32 %v331, %v425
      %v434 = vsub.f32 %v406, %v430
      %v435 = vsub.f32 %v407, %v431
      %v436 = vsub.f32 %v408, %v432
      %v437 = vsub.f32 %v409, %v433
      %v438 = vmul.f32 %v329, %v413
      %v439 = vmul.f32 %v329, %v417
      %v440 = vmul.f32 %v329, %v421
      %v441 = vmul.f32 %v329, %v425
      %v442 = vmul.f32 %v331, %v389
      %v443 = vmul.f32 %v331, %v393
      %v444 = vmul.f32 %v331, %v397
      %v445 = vmul.f32 %v331, %v401
      %v446 = vadd.f32 %v438, %v442
      %v447 = vadd.f32 %v439, %v443
      %v448 = vadd.f32 %v440, %v444
      %v449 = vadd.f32 %v441, %v445
      %v450 = vadd.f32 %v312, %v434
      %v451 = vadd.f32 %v313, %v435
      %v452 = vadd.f32 %v314, %v436
      %v453 = vadd.f32 %v315, %v437
      %v454 = vadd.f32 %v324, %v446
      %v455 = vadd.f32 %v325, %v447
      %v456 = vadd.f32 %v326, %v448
      %v457 = vadd.f32 %v327, %v449
      %s458 = scalar_lea.vmem %s189, 16
      %v459 = vld [vmem:[%s458] sm:$0xff]
      %s460 = scalar_lea.vmem %s189, 48
      %v461 = vld [vmem:[%s460] sm:$0xff]
      %s462 = scalar_lea.vmem %s196, 8
      %v463 = vld [vmem:[%s462] sm:$0xf]
      %v466 = vunpack.c.l.s4 1966171168
      %v467 = vunpack.c.0.s8 %v466
      %v468 = vlaneseq
      %v469 = vshrl.u32 %v468, 7
      %v470 = vsub.s32 %v467, %v469
      %v471 = vrot.slane %v463, %v470
      %v472 = vcombine.high %v471, %v471
      %v474 = vunpack.c.l.s4 1966171168
      %v475 = vunpack.c.0.s8 %v474
      %v476 = vlaneseq
      %v477 = vshrl.u32 %v476, 7
      %v478 = vsub.s32 %v475, %v477
      %v479 = vrot.slane %v471, %v478
      %v481 = vunpack.c.l.s4 1966171168
      %v482 = vunpack.c.0.s8 %v481
      %v483 = vlaneseq
      %v484 = vshrl.u32 %v483, 7
      %v485 = vsub.s32 %v482, %v484
      %v486 = vrot.slane %v472, %v485
      %v487 = vcombine.high %v479, %v479
      %v488 = vcombine.high %v486, %v486
      %s489 = scalar_lea.vmem %s196, 24
      %v490 = vld [vmem:[%s489] sm:$0xf]
      %v493 = vunpack.c.l.s4 1966171168
      %v494 = vunpack.c.0.s8 %v493
      %v495 = vlaneseq
      %v496 = vshrl.u32 %v495, 7
      %v497 = vsub.s32 %v494, %v496
      %v498 = vrot.slane %v490, %v497
      %v499 = vcombine.high %v498, %v498
      %v501 = vunpack.c.l.s4 1966171168
      %v502 = vunpack.c.0.s8 %v501
      %v503 = vlaneseq
      %v504 = vshrl.u32 %v503, 7
      %v505 = vsub.s32 %v502, %v504
      %v506 = vrot.slane %v498, %v505
      %v508 = vunpack.c.l.s4 1966171168
      %v509 = vunpack.c.0.s8 %v508
      %v510 = vlaneseq
      %v511 = vshrl.u32 %v510, 7
      %v512 = vsub.s32 %v509, %v511
      %v513 = vrot.slane %v499, %v512
      %v514 = vcombine.high %v506, %v506
      %v515 = vcombine.high %v513, %v513
      %v516 = vlaneseq
      %v517 = vshrl.u32 %v516, 7
      %v518 = vsub.s32 0, %v517
      %v519 = vrot.slane %v479, %v518
      %v520 = vlaneseq
      %v521 = vshrl.u32 %v520, 7
      %v522 = vsub.s32 0, %v521
      %v523 = vrot.slane %v486, %v522
      %v524 = vlaneseq
      %v525 = vshrl.u32 %v524, 7
      %v526 = vsub.s32 0, %v525
      %v527 = vrot.slane %v487, %v526
      %v528 = vlaneseq
      %v529 = vshrl.u32 %v528, 7
      %v530 = vsub.s32 0, %v529
      %v531 = vrot.slane %v488, %v530
      %v536 = vmul.f32 %v459, %v519
      %v537 = vmul.f32 %v459, %v523
      %v538 = vmul.f32 %v459, %v527
      %v539 = vmul.f32 %v459, %v531
      %v540 = vlaneseq
      %v541 = vshrl.u32 %v540, 7
      %v542 = vsub.s32 0, %v541
      %v543 = vrot.slane %v506, %v542
      %v544 = vlaneseq
      %v545 = vshrl.u32 %v544, 7
      %v546 = vsub.s32 0, %v545
      %v547 = vrot.slane %v513, %v546
      %v548 = vlaneseq
      %v549 = vshrl.u32 %v548, 7
      %v550 = vsub.s32 0, %v549
      %v551 = vrot.slane %v514, %v550
      %v552 = vlaneseq
      %v553 = vshrl.u32 %v552, 7
      %v554 = vsub.s32 0, %v553
      %v555 = vrot.slane %v515, %v554
      %v560 = vmul.f32 %v461, %v543
      %v561 = vmul.f32 %v461, %v547
      %v562 = vmul.f32 %v461, %v551
      %v563 = vmul.f32 %v461, %v555
      %v564 = vsub.f32 %v536, %v560
      %v565 = vsub.f32 %v537, %v561
      %v566 = vsub.f32 %v538, %v562
      %v567 = vsub.f32 %v539, %v563
      %v568 = vmul.f32 %v459, %v543
      %v569 = vmul.f32 %v459, %v547
      %v570 = vmul.f32 %v459, %v551
      %v571 = vmul.f32 %v459, %v555
      %v572 = vmul.f32 %v461, %v519
      %v573 = vmul.f32 %v461, %v523
      %v574 = vmul.f32 %v461, %v527
      %v575 = vmul.f32 %v461, %v531
      %v576 = vadd.f32 %v568, %v572
      %v577 = vadd.f32 %v569, %v573
      %v578 = vadd.f32 %v570, %v574
      %v579 = vadd.f32 %v571, %v575
      %v580 = vadd.f32 %v450, %v564
      %v581 = vadd.f32 %v451, %v565
      %v582 = vadd.f32 %v452, %v566
      %v583 = vadd.f32 %v453, %v567
      %v584 = vadd.f32 %v454, %v576
      %v585 = vadd.f32 %v455, %v577
      %v586 = vadd.f32 %v456, %v578
      %v587 = vadd.f32 %v457, %v579
      %s588 = scalar_lea.vmem %s189, 24
      %v589 = vld [vmem:[%s588] sm:$0xff]
      %s590 = scalar_lea.vmem %s189, 56
      %v591 = vld [vmem:[%s590] sm:$0xff]
      %s592 = scalar_lea.vmem %s196, 12
      %v593 = vld [vmem:[%s592] sm:$0xf]
      %v596 = vunpack.c.l.s4 1966171168
      %v597 = vunpack.c.0.s8 %v596
      %v598 = vlaneseq
      %v599 = vshrl.u32 %v598, 7
      %v600 = vsub.s32 %v597, %v599
      %v601 = vrot.slane %v593, %v600
      %v602 = vcombine.high %v601, %v601
      %v604 = vunpack.c.l.s4 1966171168
      %v605 = vunpack.c.0.s8 %v604
      %v606 = vlaneseq
      %v607 = vshrl.u32 %v606, 7
      %v608 = vsub.s32 %v605, %v607
      %v609 = vrot.slane %v601, %v608
      %v611 = vunpack.c.l.s4 1966171168
      %v612 = vunpack.c.0.s8 %v611
      %v613 = vlaneseq
      %v614 = vshrl.u32 %v613, 7
      %v615 = vsub.s32 %v612, %v614
      %v616 = vrot.slane %v602, %v615
      %v617 = vcombine.high %v609, %v609
      %v618 = vcombine.high %v616, %v616
      %s619 = scalar_lea.vmem %s196, 28
      %v620 = vld [vmem:[%s619] sm:$0xf]
      %v623 = vunpack.c.l.s4 1966171168
      %v624 = vunpack.c.0.s8 %v623
      %v625 = vlaneseq
      %v626 = vshrl.u32 %v625, 7
      %v627 = vsub.s32 %v624, %v626
      %v628 = vrot.slane %v620, %v627
      %v629 = vcombine.high %v628, %v628
      %v631 = vunpack.c.l.s4 1966171168
      %v632 = vunpack.c.0.s8 %v631
      %v633 = vlaneseq
      %v634 = vshrl.u32 %v633, 7
      %v635 = vsub.s32 %v632, %v634
      %v636 = vrot.slane %v628, %v635
      %v638 = vunpack.c.l.s4 1966171168
      %v639 = vunpack.c.0.s8 %v638
      %v640 = vlaneseq
      %v641 = vshrl.u32 %v640, 7
      %v642 = vsub.s32 %v639, %v641
      %v643 = vrot.slane %v629, %v642
      %v644 = vcombine.high %v636, %v636
      %v645 = vcombine.high %v643, %v643
      %v646 = vlaneseq
      %v647 = vshrl.u32 %v646, 7
      %v648 = vsub.s32 0, %v647
      %v649 = vrot.slane %v609, %v648
      %v650 = vlaneseq
      %v651 = vshrl.u32 %v650, 7
      %v652 = vsub.s32 0, %v651
      %v653 = vrot.slane %v616, %v652
      %v654 = vlaneseq
      %v655 = vshrl.u32 %v654, 7
      %v656 = vsub.s32 0, %v655
      %v657 = vrot.slane %v617, %v656
      %v658 = vlaneseq
      %v659 = vshrl.u32 %v658, 7
      %v660 = vsub.s32 0, %v659
      %v661 = vrot.slane %v618, %v660
      %v666 = vmul.f32 %v589, %v649
      %v667 = vmul.f32 %v589, %v653
      %v668 = vmul.f32 %v589, %v657
      %v669 = vmul.f32 %v589, %v661
      %v670 = vlaneseq
      %v671 = vshrl.u32 %v670, 7
      %v672 = vsub.s32 0, %v671
      %v673 = vrot.slane %v636, %v672
      %v674 = vlaneseq
      %v675 = vshrl.u32 %v674, 7
      %v676 = vsub.s32 0, %v675
      %v677 = vrot.slane %v643, %v676
      %v678 = vlaneseq
      %v679 = vshrl.u32 %v678, 7
      %v680 = vsub.s32 0, %v679
      %v681 = vrot.slane %v644, %v680
      %v682 = vlaneseq
      %v683 = vshrl.u32 %v682, 7
      %v684 = vsub.s32 0, %v683
      %v685 = vrot.slane %v645, %v684
      %v690 = vmul.f32 %v591, %v673
      %v691 = vmul.f32 %v591, %v677
      %v692 = vmul.f32 %v591, %v681
      %v693 = vmul.f32 %v591, %v685
      %v694 = vsub.f32 %v666, %v690
      %v695 = vsub.f32 %v667, %v691
      %v696 = vsub.f32 %v668, %v692
      %v697 = vsub.f32 %v669, %v693
      %v698 = vmul.f32 %v589, %v673
      %v699 = vmul.f32 %v589, %v677
      %v700 = vmul.f32 %v589, %v681
      %v701 = vmul.f32 %v589, %v685
      %v702 = vmul.f32 %v591, %v649
      %v703 = vmul.f32 %v591, %v653
      %v704 = vmul.f32 %v591, %v657
      %v705 = vmul.f32 %v591, %v661
      %v706 = vadd.f32 %v698, %v702
      %v707 = vadd.f32 %v699, %v703
      %v708 = vadd.f32 %v700, %v704
      %v709 = vadd.f32 %v701, %v705
      %v710 = vadd.f32 %v580, %v694
      %v711 = vadd.f32 %v581, %v695
      %v712 = vadd.f32 %v582, %v696
      %v713 = vadd.f32 %v583, %v697
      %v714 = vadd.f32 %v584, %v706
      %v715 = vadd.f32 %v585, %v707
      %v716 = vadd.f32 %v586, %v708
      %v717 = vadd.f32 %v587, %v709
      %vm718 = vcmask 130048
      %719 = vst.msk [vmem:[%s206] sm:$0xff] %vm718, %v710
      %720 = vst.msk [vmem:[%s206 + $0x8] sm:$0xff] %vm718, %v711
      %721 = vst.msk [vmem:[%s206 + $0x10] sm:$0xff] %vm718, %v712
      %722 = vst.msk [vmem:[%s206 + $0x18] sm:$0xff] %vm718, %v713
      %s723 = scalar_lea.vmem %s206, 32
      %724 = vst.msk [vmem:[%s723] sm:$0xff] %vm718, %v714
      %725 = vst.msk [vmem:[%s723 + $0x8] sm:$0xff] %vm718, %v715
      %726 = vst.msk [vmem:[%s723 + $0x10] sm:$0xff] %vm718, %v716
      %727 = vst.msk [vmem:[%s723 + $0x18] sm:$0xff] %vm718, %v717
      %s728 = smul.u32 2, %s17
      %p729 = scmp.lt.s32.totalorder %s728, 3
      %s730 = scalar_select %p729, %s728, 3
      %p731 = scmp.lt.s32.totalorder %s18, 0
      %s732 = scalar_select %p731, %s18, 0
      %s733 = smul.addr %s730, 4
      %s734 = sadd.s32 %s732, %s733
      %s735 = smul.addr %s734, 8
      %s736 = scalar_lea.vmem %s2, %s735
      // Predicated region
      $region29: #{_forward_impl.1} parent=27 // pred_check
        %p737 = pneg %p99
      $region30: #{_forward_impl.1} parent=27 // pred_check_branch
        %739 = sbr.rel (%p737) target = $region32
      $region31: #{_forward_impl.1} parent=27 // pred_region
        %s740 = smul.u32 2, %s17
      $region32: #{_forward_impl.1} parent=27 // pred_fallthru
        _
    $region28: #{_forward_impl.1} parent=5 // pred_fallthru
      _
    %p741 = scmp.le.s32.totalorder 2, %s8
    // Predicated region
    $region33: #{_forward_impl.1} parent=5 // pred_check
      %p742 = pneg %p741
    $region34: #{_forward_impl.1} parent=5 // pred_check_branch
      %744 = sbr.rel (%p742) target = $region36
    $region35: #{_forward_impl.1} parent=5 // pred_region
      %s745 = ssub.s32 %s8, 2
      // Predicated region
      $region37: #{_forward_impl.1} parent=35 // pred_check
        %p746 = pneg %p105
      $region38: #{_forward_impl.1} parent=35 // pred_check_branch
        %748 = sbr.rel (%p746) target = $region40
      $region39: #{_forward_impl.1} parent=35 // pred_region
        %s749 = smul.u32 2, %s19
        %p750 = scmp.lt.s32.totalorder %s749, 3
        %s751 = scalar_select %p750, %s749, 3
        %p752 = scmp.lt.s32.totalorder %s20, 0
        %s753 = scalar_select %p752, %s20, 0
        %s754 = smul.addr %s751, 4
        %s755 = sadd.s32 %s753, %s754
        %s756 = smul.addr %s755, 8
        %s757 = scalar_lea.vmem %s2, %s756
      $region40: #{_forward_impl.1} parent=35 // pred_fallthru
        _
    $region36: #{_forward_impl.1} parent=5 // pred_fallthru
      _
  $region6: #{_forward_impl.1} parent=0 // loop_footer
    %s12 = sadd.s32 1, %s8
  $region7: #{_forward_impl.1} parent=0 // loop_footer_branch
    %7 = sbr.rel target = $region3
  $region8: #{_forward_impl.1} parent=0 // loop_exit
    _

// kernel: reverse.0
$region0: #{reverse.0}
  %s0 = inlined_call_operand.vmem [shape: f32[2,4,16,7], index: 0, kind: input, shape index: {}]
  %s1 = inlined_call_operand.vmem [shape: f32[2,4,16,7], index: 1, kind: output, shape index: {}]
  $region1: #{reverse.0} parent=0
    #allocation0 [shape = 'u8[65536]{0}', space=vmem, size = 0x10000, scoped, tag = 'operand span for operand 0']
    #allocation1 [shape = 'u8[32768]{0}', space=vmem, size = 0x8000, scoped, tag = 'operand span for operand 1']
    %s2 = scalar_lea.vmem [#allocation0], 8
    // Predicated region
    $region2: #{reverse.0} parent=1 // pred_check
      _
    $region3: #{reverse.0} parent=1 // pred_check_branch
      %4 = sbr.rel (0) target = $region5
    $region4: #{reverse.0} parent=1 // pred_region
      // Predicated region
      $region6: #{reverse.0} parent=4 // pred_check
        _
      $region7: #{reverse.0} parent=4 // pred_check_branch
        %6 = sbr.rel (0) target = $region9
      $region8: #{reverse.0} parent=4 // pred_region
        // Predicated region
        $region21: #{reverse.0} parent=8 // pred_check
          _
        $region22: #{reverse.0} parent=8 // pred_check_branch
          %36 = sbr.rel (0) target = $region24
        $region23: #{reverse.0} parent=8 // pred_region
          loop: start=0, step=1, limit=1
          $region25: #{reverse.0} parent=23 // loop_pre_header
            _
          $region26: #{reverse.0} parent=23 // loop_header
            %s38 = sphi 0, %s42
            %p39 = scmp.ge.s32.totalorder %s38, 1
            %s43 = sphi %s0, %s0
            %s44 = sphi %s2, %s2
          $region27: #{reverse.0} parent=23 // loop_header_branch
            %41 = sbr.rel (%p39) target = $region31
          $region28: #{reverse.0} parent=23 // loop_body
            %v45 = vld [vmem:[%s43] sm:$0xff]
            %46 = vst [vmem:[%s44] sm:$0xff] %v45
            %v47 = vld [vmem:[%s43 + $0x8] sm:$0xff]
            %48 = vst [vmem:[%s44 + $0x10] sm:$0xff] %v47
            %v49 = vld [vmem:[%s43 + $0x10] sm:$0xff]
            %50 = vst [vmem:[%s44 + $0x20] sm:$0xff] %v49
            %v51 = vld [vmem:[%s43 + $0x18] sm:$0xff]
            %52 = vst [vmem:[%s44 + $0x30] sm:$0xff] %v51
            %v53 = vld [vmem:[%s43 + $0x20] sm:$0xff]
            %54 = vst [vmem:[%s44 + $0x40] sm:$0xff] %v53
            %v55 = vld [vmem:[%s43 + $0x28] sm:$0xff]
            %56 = vst [vmem:[%s44 + $0x50] sm:$0xff] %v55
            %v57 = vld [vmem:[%s43 + $0x30] sm:$0xff]
            %58 = vst [vmem:[%s44 + $0x60] sm:$0xff] %v57
            %v59 = vld [vmem:[%s43 + $0x38] sm:$0xff]
            %60 = vst [vmem:[%s44 + $0x70] sm:$0xff] %v59
          $region29: #{reverse.0} parent=23 // loop_footer
            %s42 = sadd.s32 1, %s38
          $region30: #{reverse.0} parent=23 // loop_footer_branch
            %37 = sbr.rel target = $region26
          $region31: #{reverse.0} parent=23 // loop_exit
            _
        $region24: #{reverse.0} parent=8 // pred_fallthru
          _
        // Predicated region
        $region32: #{reverse.0} parent=8 // pred_check
          _
        $region33: #{reverse.0} parent=8 // pred_check_branch
          %62 = sbr.rel target = $region35
        $region34: #{reverse.0} parent=8 // pred_region
          _
        $region35: #{reverse.0} parent=8 // pred_fallthru
          _
      $region9: #{reverse.0} parent=4 // pred_fallthru
        _
      // Predicated region
      $region10: #{reverse.0} parent=4 // pred_check
        _
      $region11: #{reverse.0} parent=4 // pred_check_branch
        %8 = sbr.rel target = $region13
      $region12: #{reverse.0} parent=4 // pred_region
        %s10 = ssub.s32 256, 1
        loop: start=0, step=1, limit=1
        $region14: #{reverse.0} parent=12 // loop_pre_header
          _
        $region15: #{reverse.0} parent=12 // loop_header
          %s12 = sphi 0, %s16
          %p13 = scmp.ge.s32.totalorder %s12, 1
          %s17 = sphi %s0, %s0
          %s18 = sphi %s2, %s2
        $region16: #{reverse.0} parent=12 // loop_header_branch
          %15 = sbr.rel (%p13) target = $region20
        $region17: #{reverse.0} parent=12 // loop_body
          %v19 = vld [vmem:[%s17] sm:%s10]
          %20 = vst [vmem:[%s18] sm:%s10] %v19
          %v21 = vld [vmem:[%s17 + $0x8] sm:%s10]
          %22 = vst [vmem:[%s18 + $0x10] sm:%s10] %v21
          %v23 = vld [vmem:[%s17 + $0x10] sm:%s10]
          %24 = vst [vmem:[%s18 + $0x20] sm:%s10] %v23
          %v25 = vld [vmem:[%s17 + $0x18] sm:%s10]
          %26 = vst [vmem:[%s18 + $0x30] sm:%s10] %v25
          %v27 = vld [vmem:[%s17 + $0x20] sm:%s10]
          %28 = vst [vmem:[%s18 + $0x40] sm:%s10] %v27
          %v29 = vld [vmem:[%s17 + $0x28] sm:%s10]
          %30 = vst [vmem:[%s18 + $0x50] sm:%s10] %v29
          %v31 = vld [vmem:[%s17 + $0x30] sm:%s10]
          %32 = vst [vmem:[%s18 + $0x60] sm:%s10] %v31
          %v33 = vld [vmem:[%s17 + $0x38] sm:%s10]
          %34 = vst [vmem:[%s18 + $0x70] sm:%s10] %v33
        $region18: #{reverse.0} parent=12 // loop_footer
          %s16 = sadd.s32 1, %s12
        $region19: #{reverse.0} parent=12 // loop_footer_branch
          %11 = sbr.rel target = $region15
        $region20: #{reverse.0} parent=12 // loop_exit
          _
      $region13: #{reverse.0} parent=4 // pred_fallthru
        _
    $region5: #{reverse.0} parent=1 // pred_fallthru
      _
    %63 = vnop
    %s64 = scalar_lea.vmem [#allocation0], 7
    %v65 = vld [vmem:[%s64] ss:$-1 sm:$0xff]
    %v66 = vrot.slane %v65, 1
    %67 = vst [vmem:[#allocation1] sm:$0xff] %v66
    %s68 = scalar_lea.vmem [#allocation0], 8
    %s69 = scalar_lea.vmem %s68, 7 [#allocation0]
    %v70 = vld [vmem:[%s69] ss:$-1 sm:$0xff]
    %v71 = vrot.slane %v70, 1
    %v72 = vlaneseq
    %v73 = vshrl.u32 %v72, 7
    %vm74 = vcmp.lt.s32.totalorder %v73, 7
    %75 = vst.msk [vmem:[#allocation1] sm:$0xff] %vm74, %v71
    %s76 = scalar_lea.vmem [#allocation1], 8
    %s77 = scalar_lea.vmem [#allocation0], 16
    %s78 = scalar_lea.vmem %s77, 7 [#allocation0]
    %v79 = vld [vmem:[%s78] ss:$-1 sm:$0xff]
    %v80 = vrot.slane %v79, 1
    %81 = vst [vmem:[%s76] sm:$0xff] %v80
    %s82 = scalar_lea.vmem %s77, 8 [#allocation0]
    %s83 = scalar_lea.vmem %s82, 7 [#allocation0]
    %v84 = vld [vmem:[%s83] ss:$-1 sm:$0xff]
    %v85 = vrot.slane %v84, 1
    %v86 = vlaneseq
    %v87 = vshrl.u32 %v86, 7
    %vm88 = vcmp.lt.s32.totalorder %v87, 7
    %89 = vst.msk [vmem:[%s76] sm:$0xff] %vm88, %v85
    %s90 = scalar_lea.vmem [#allocation1], 16
    %s91 = scalar_lea.vmem [#allocation0], 32
    %s92 = scalar_lea.vmem %s91, 7 [#allocation0]
    %v93 = vld [vmem:[%s92] ss:$-1 sm:$0xff]
    %v94 = vrot.slane %v93, 1
    %95 = vst [vmem:[%s90] sm:$0xff] %v94
    %s96 = scalar_lea.vmem %s91, 8 [#allocation0]
    %s97 = scalar_lea.vmem %s96, 7 [#allocation0]
    %v98 = vld [vmem:[%s97] ss:$-1 sm:$0xff]
    %v99 = vrot.slane %v98, 1
    %v100 = vlaneseq
    %v101 = vshrl.u32 %v100, 7
    %vm102 = vcmp.lt.s32.totalorder %v101, 7
    %103 = vst.msk [vmem:[%s90] sm:$0xff] %vm102, %v99
    %s104 = scalar_lea.vmem [#allocation1], 24
    %s105 = scalar_lea.vmem [#allocation0], 48
    %s106 = scalar_lea.vmem %s105, 7 [#allocation0]
    %v107 = vld [vmem:[%s106] ss:$-1 sm:$0xff]
    %v108 = vrot.slane %v107, 1
    %109 = vst [vmem:[%s104] sm:$0xff] %v108
    %s110 = scalar_lea.vmem %s105, 8 [#allocation0]
    %s111 = scalar_lea.vmem %s110, 7 [#allocation0]
    %v112 = vld [vmem:[%s111] ss:$-1 sm:$0xff]
    %v113 = vrot.slane %v112, 1
    %v114 = vlaneseq
    %v115 = vshrl.u32 %v114, 7
    %vm116 = vcmp.lt.s32.totalorder %v115, 7
    %117 = vst.msk [vmem:[%s104] sm:$0xff] %vm116, %v113
    %s118 = scalar_lea.vmem [#allocation1], 32
    %s119 = scalar_lea.vmem [#allocation0], 64
    %s120 = scalar_lea.vmem %s119, 7 [#allocation0]
    %v121 = vld [vmem:[%s120] ss:$-1 sm:$0xff]
    %v122 = vrot.slane %v121, 1
    %123 = vst [vmem:[%s118] sm:$0xff] %v122
    %s124 = scalar_lea.vmem %s119, 8 [#allocation0]
    %s125 = scalar_lea.vmem %s124, 7 [#allocation0]
    %v126 = vld [vmem:[%s125] ss:$-1 sm:$0xff]
    %v127 = vrot.slane %v126, 1
    %v128 = vlaneseq
    %v129 = vshrl.u32 %v128, 7
    %vm130 = vcmp.lt.s32.totalorder %v129, 7
    %131 = vst.msk [vmem:[%s118] sm:$0xff] %vm130, %v127
    %s132 = scalar_lea.vmem [#allocation1], 40
    %s133 = scalar_lea.vmem [#allocation0], 80
    %s134 = scalar_lea.vmem %s133, 7 [#allocation0]
    %v135 = vld [vmem:[%s134] ss:$-1 sm:$0xff]
    %v136 = vrot.slane %v135, 1
    %137 = vst [vmem:[%s132] sm:$0xff] %v136
    %s138 = scalar_lea.vmem %s133, 8 [#allocation0]
    %s139 = scalar_lea.vmem %s138, 7 [#allocation0]
    %v140 = vld [vmem:[%s139] ss:$-1 sm:$0xff]
    %v141 = vrot.slane %v140, 1
    %v142 = vlaneseq
    %v143 = vshrl.u32 %v142, 7
    %vm144 = vcmp.lt.s32.totalorder %v143, 7
    %145 = vst.msk [vmem:[%s132] sm:$0xff] %vm144, %v141
    %s146 = scalar_lea.vmem [#allocation1], 48
    %s147 = scalar_lea.vmem [#allocation0], 96
    %s148 = scalar_lea.vmem %s147, 7 [#allocation0]
    %v149 = vld [vmem:[%s148] ss:$-1 sm:$0xff]
    %v150 = vrot.slane %v149, 1
    %151 = vst [vmem:[%s146] sm:$0xff] %v150
    %s152 = scalar_lea.vmem %s147, 8 [#allocation0]
    %s153 = scalar_lea.vmem %s152, 7 [#allocation0]
    %v154 = vld [vmem:[%s153] ss:$-1 sm:$0xff]
    %v155 = vrot.slane %v154, 1
    %v156 = vlaneseq
    %v157 = vshrl.u32 %v156, 7
    %vm158 = vcmp.lt.s32.totalorder %v157, 7
    %159 = vst.msk [vmem:[%s146] sm:$0xff] %vm158, %v155
    %s160 = scalar_lea.vmem [#allocation1], 56
    %s161 = scalar_lea.vmem [#allocation0], 112
    %s162 = scalar_lea.vmem %s161, 7 [#allocation0]
    %v163 = vld [vmem:[%s162] ss:$-1 sm:$0xff]
    %v164 = vrot.slane %v163, 1
    %165 = vst [vmem:[%s160] sm:$0xff] %v164
    %s166 = scalar_lea.vmem %s161, 8 [#allocation0]
    %s167 = scalar_lea.vmem %s166, 7 [#allocation0]
    %v168 = vld [vmem:[%s167] ss:$-1 sm:$0xff]
    %v169 = vrot.slane %v168, 1
    %v170 = vlaneseq
    %v171 = vshrl.u32 %v170, 7
    %vm172 = vcmp.lt.s32.totalorder %v171, 7
    %173 = vst.msk [vmem:[%s160] sm:$0xff] %vm172, %v169
    // Predicated region
    $region36: #{reverse.0} parent=1 // pred_check
      _
    $region37: #{reverse.0} parent=1 // pred_check_branch
      %175 = sbr.rel (0) target = $region39
    $region38: #{reverse.0} parent=1 // pred_region
      // Predicated region
      $region40: #{reverse.0} parent=38 // pred_check
        _
      $region41: #{reverse.0} parent=38 // pred_check_branch
        %177 = sbr.rel (0) target = $region43
      $region42: #{reverse.0} parent=38 // pred_region
        // Predicated region
        $region55: #{reverse.0} parent=42 // pred_check
          _
        $region56: #{reverse.0} parent=42 // pred_check_branch
          %207 = sbr.rel (0) target = $region58
        $region57: #{reverse.0} parent=42 // pred_region
          loop: start=0, step=1, limit=1
          $region59: #{reverse.0} parent=57 // loop_pre_header
            _
          $region60: #{reverse.0} parent=57 // loop_header
            %s209 = sphi 0, %s213
            %p210 = scmp.ge.s32.totalorder %s209, 1
            %s214 = sphi [#allocation1], [#allocation1]
            %s215 = sphi %s1, %s1
          $region61: #{reverse.0} parent=57 // loop_header_branch
            %212 = sbr.rel (%p210) target = $region65
          $region62: #{reverse.0} parent=57 // loop_body
            %v216 = vld [vmem:[%s214] sm:$0xff]
            %217 = vst [vmem:[%s215] sm:$0xff] %v216
            %v218 = vld [vmem:[%s214 + $0x8] sm:$0xff]
            %219 = vst [vmem:[%s215 + $0x8] sm:$0xff] %v218
            %v220 = vld [vmem:[%s214 + $0x10] sm:$0xff]
            %221 = vst [vmem:[%s215 + $0x10] sm:$0xff] %v220
            %v222 = vld [vmem:[%s214 + $0x18] sm:$0xff]
            %223 = vst [vmem:[%s215 + $0x18] sm:$0xff] %v222
            %v224 = vld [vmem:[%s214 + $0x20] sm:$0xff]
            %225 = vst [vmem:[%s215 + $0x20] sm:$0xff] %v224
            %v226 = vld [vmem:[%s214 + $0x28] sm:$0xff]
            %227 = vst [vmem:[%s215 + $0x28] sm:$0xff] %v226
            %v228 = vld [vmem:[%s214 + $0x30] sm:$0xff]
            %229 = vst [vmem:[%s215 + $0x30] sm:$0xff] %v228
            %v230 = vld [vmem:[%s214 + $0x38] sm:$0xff]
            %231 = vst [vmem:[%s215 + $0x38] sm:$0xff] %v230
          $region63: #{reverse.0} parent=57 // loop_footer
            %s213 = sadd.s32 1, %s209
          $region64: #{reverse.0} parent=57 // loop_footer_branch
            %208 = sbr.rel target = $region60
          $region65: #{reverse.0} parent=57 // loop_exit
            _
        $region58: #{reverse.0} parent=42 // pred_fallthru
          _
        // Predicated region
        $region66: #{reverse.0} parent=42 // pred_check
          _
        $region67: #{reverse.0} parent=42 // pred_check_branch
          %233 = sbr.rel target = $region69
        $region68: #{reverse.0} parent=42 // pred_region
          _
        $region69: #{reverse.0} parent=42 // pred_fallthru
          _
      $region43: #{reverse.0} parent=38 // pred_fallthru
        _
      // Predicated region
      $region44: #{reverse.0} parent=38 // pred_check
        _
      $region45: #{reverse.0} parent=38 // pred_check_branch
        %179 = sbr.rel target = $region47
      $region46: #{reverse.0} parent=38 // pred_region
        %s181 = ssub.s32 256, 1
        loop: start=0, step=1, limit=1
        $region48: #{reverse.0} parent=46 // loop_pre_header
          _
        $region49: #{reverse.0} parent=46 // loop_header
          %s183 = sphi 0, %s187
          %p184 = scmp.ge.s32.totalorder %s183, 1
          %s188 = sphi [#allocation1], [#allocation1]
          %s189 = sphi %s1, %s1
        $region50: #{reverse.0} parent=46 // loop_header_branch
          %186 = sbr.rel (%p184) target = $region54
        $region51: #{reverse.0} parent=46 // loop_body
          %v190 = vld [vmem:[%s188] sm:%s181]
          %191 = vst [vmem:[%s189] sm:%s181] %v190
          %v192 = vld [vmem:[%s188 + $0x8] sm:%s181]
          %193 = vst [vmem:[%s189 + $0x8] sm:%s181] %v192
          %v194 = vld [vmem:[%s188 + $0x10] sm:%s181]
          %195 = vst [vmem:[%s189 + $0x10] sm:%s181] %v194
          %v196 = vld [vmem:[%s188 + $0x18] sm:%s181]
          %197 = vst [vmem:[%s189 + $0x18] sm:%s181] %v196
          %v198 = vld [vmem:[%s188 + $0x20] sm:%s181]
          %199 = vst [vmem:[%s189 + $0x20] sm:%s181] %v198
          %v200 = vld [vmem:[%s188 + $0x28] sm:%s181]
          %201 = vst [vmem:[%s189 + $0x28] sm:%s181] %v200
          %v202 = vld [vmem:[%s188 + $0x30] sm:%s181]
          %203 = vst [vmem:[%s189 + $0x30] sm:%s181] %v202
          %v204 = vld [vmem:[%s188 + $0x38] sm:%s181]
          %205 = vst [vmem:[%s189 + $0x38] sm:%s181] %v204
        $region52: #{reverse.0} parent=46 // loop_footer
          %s187 = sadd.s32 1, %s183
        $region53: #{reverse.0} parent=46 // loop_footer_branch
          %182 = sbr.rel target = $region49
        $region54: #{reverse.0} parent=46 // loop_exit
          _
      $region47: #{reverse.0} parent=38 // pred_fallthru
        _
    $region39: #{reverse.0} parent=1 // pred_fallthru
      _
    %234 = vnop

</llo_original>
